<compile_context>
chip_gen: v5e
topology: v5e:2x2
jax: 0.10.0
libtpu: 0.0.40
codegen_flags: <defaults>
</compile_context>

<pallas_src>
import functools

import jax
import jax.numpy as jnp
from jax.experimental import pallas as pl
from jax.experimental.pallas import tpu as pltpu


_LANE = 128                     # TPU lane width (last-dim quantum)
_SUBLANE = 8                    # sublane quantum for f32
_TARGET_TILE_BYTES = 6 << 20    # per tile buffer; x4 (double-buffered in+out) ~24 MiB


def _round_up(x, m):
    return ((x + m - 1) // m) * m


def _layernorm_kernel(x_ref, gb_ref, o_ref, *, d, eps):
    """LayerNorm over the last dim with PyTorch-`std` (unbiased) semantics.

    The feature axis may be zero-padded to a multiple of 128 lanes; because the
    pad value is 0, sum(x) and sum(x*x) over the padded lanes equal the sums
    over the real `d` features, so no in-kernel masking is needed.
    """
    x = x_ref[...].astype(jnp.float32)                      # (rows_tile, Dp)
    g = gb_ref[0:1, :].astype(jnp.float32)                  # (1, Dp)
    b = gb_ref[1:2, :].astype(jnp.float32)                  # (1, Dp)

    # Single pass over the lanes: sum and sum-of-squares, then derive moments.
    s = jnp.sum(x, axis=-1, keepdims=True)
    ss = jnp.sum(x * x, axis=-1, keepdims=True)
    mean = s * (1.0 / d)
    # Unbiased variance (Bessel correction), exactly like torch.Tensor.std().
    var = (ss - s * s * (1.0 / d)) * (1.0 / (d - 1))
    var = jnp.maximum(var, 0.0)                             # guard fp cancellation
    std = jnp.sqrt(var)
    inv = pl.reciprocal(std + eps, approx=False)            # EUP, full f32 accuracy
    y = g * (x - mean) * inv + b
    o_ref[...] = y.astype(o_ref.dtype)


def _pick_row_tile(n_rows, d_pad, itemsize):
    """Largest row tile (multiple of 8, <=1024) whose buffers stay v7x-safe."""
    rows = _TARGET_TILE_BYTES // (d_pad * itemsize)
    rows = int(max(_SUBLANE, min(1024, (rows // _SUBLANE) * _SUBLANE)))
    r8 = _round_up(n_rows, _SUBLANE)
    rows = min(rows, r8)
    # Prefer >= 2 grid steps so v7x's two TensorCores both get work.
    if r8 >= 2 * _SUBLANE and -(-r8 // rows) < 2:
        rows = max(_SUBLANE, ((r8 // 2) // _SUBLANE) * _SUBLANE)
    return rows


def pallas_layernorm(x2d, gamma, beta, *, eps=1e-6, row_tile=None):
    """x2d: (R, D); gamma/beta: (D,).  Returns LayerNorm(x2d) of shape (R, D)."""
    R, D = x2d.shape
    assert D >= 2, "unbiased std (torch.std) needs at least 2 features"

    # Lane-dense feature axis: pad D up to a multiple of 128 (no-op when the
    # usual d_model % 128 == 0 holds).
    Dp = D if D % _LANE == 0 else _round_up(D, _LANE)

    itemsize = jnp.dtype(x2d.dtype).itemsize
    if row_tile is None:
        row_tile = _pick_row_tile(R, Dp, itemsize)
    row_tile = max(_SUBLANE, (int(row_tile) // _SUBLANE) * _SUBLANE)

    # Tail handling: pad rows up to a multiple of the tile.  Padded rows are
    # zeros -> finite garbage output that is sliced away below.
    Rp = _round_up(R, row_tile)

    xp = x2d
    if (Rp, Dp) != (R, D):
        xp = jnp.pad(x2d, ((0, Rp - R), (0, Dp - D)))
    gp = jnp.pad(gamma.astype(x2d.dtype), (0, Dp - D), constant_values=1.0)
    bp = jnp.pad(beta.astype(x2d.dtype), (0, Dp - D), constant_values=0.0)
    gb = jnp.concatenate([gp[None, :], bp[None, :]], axis=0)     # (2, Dp)

    tile_bytes = row_tile * Dp * itemsize
    # 2x double-buffered input + 2x double-buffered output + gamma/beta + headroom.
    vmem_limit = int(min(60 << 20, max(24 << 20, 4 * tile_bytes + (2 << 20))))

    kernel = functools.partial(_layernorm_kernel, d=D, eps=eps)
    out = pl.pallas_call(
        kernel,
        out_shape=jax.ShapeDtypeStruct((Rp, Dp), x2d.dtype),
        grid_spec=pltpu.PrefetchScalarGridSpec(
            num_scalar_prefetch=0,
            grid=(Rp // row_tile,),
            in_specs=[
                pl.BlockSpec((row_tile, Dp), lambda i: (i, 0)),
                pl.BlockSpec((2, Dp), lambda i: (0, 0)),   # constant block: no re-DMA
            ],
            out_specs=pl.BlockSpec((row_tile, Dp), lambda i: (i, 0)),
        ),
        compiler_params=pltpu.CompilerParams(
            dimension_semantics=("parallel",),
            vmem_limit_bytes=vmem_limit,
        ),
    )(xp, gb)

    if (Rp, Dp) != (R, D):
        out = out[:R, :D]
    return out


def decoder_forward(x, tgt_mask, params):
    """Decoder.forward: N (abstract -> identity) layers, then final LayerNorm."""
    # Generic layer stack (identity — see TODO at top of file).
    del tgt_mask
    B, S, D = x.shape
    y2d = pallas_layernorm(x.reshape(B * S, D),
                           params["norm_a2"], params["norm_b2"], eps=1e-6)
    return y2d.reshape(B, S, D)


def _reference_layernorm(x, gamma, beta, eps=1e-6):
    mean = jnp.mean(x, axis=-1, keepdims=True)
    var = jnp.var(x, axis=-1, keepdims=True, ddof=1)   # unbiased, like torch.std
    std = jnp.sqrt(var)
    return gamma * (x - mean) / (std + eps) + beta


if __name__ == "__main__":
    key = jax.random.PRNGKey(0)
    B, S, D = 2, 8, 32          # batch, target-seq, d_model (= layer.size)
    N_LAYERS = 2                 # N generic decoder layers (abstract bodies)

    x = jax.random.normal(key, (B, S, D), dtype=jnp.float32)
    # causal target mask (shape (B, S, S)); unused by the abstract layer bodies
    tgt_mask = jnp.tril(jnp.ones((S, S), dtype=jnp.float32))[None].repeat(B, axis=0)

    # Deterministic parameter init, matching nn.Parameter(torch.ones/zeros).
    params = {
        "norm_a2": jnp.ones((D,), dtype=jnp.float32),
        "norm_b2": jnp.zeros((D,), dtype=jnp.float32),
    }

    out = decoder_forward(x, tgt_mask, params)
    out = jax.block_until_ready(out)

    ref = _reference_layernorm(x, params["norm_a2"], params["norm_b2"])
    assert out.shape == (B, S, D)
    assert jnp.allclose(out, ref, atol=1e-5, rtol=1e-5), "mismatch vs reference"

    print("KERNEL_OK")
</pallas_src>

<mosaic_0001>
module attributes {stable_mosaic.version = 11 : i64} {
  func.func @_layernorm_kernel(%arg0: i32, %arg1: memref<8x128xf32, #tpu.memory_space<vmem>>, %arg2: memref<2x128xf32, #tpu.memory_space<vmem>>, %arg3: memref<8x128xf32, #tpu.memory_space<vmem>>) attributes {dimension_semantics = [#tpu.dimension_semantics<parallel>], iteration_bounds = array<i64: 2>, scalar_prefetch = 0 : i64, scratch_operands = 0 : i64, tpu.core_type = #tpu.core_type<tc>, window_params = [{transform_indices = @transform_0, window_bounds = array<i64: 8, 128>}, {pipeline_mode = #tpu.pipeline_mode<synchronous>, transform_indices = @transform_1, window_bounds = array<i64: 2, 128>}, {transform_indices = @transform_2, window_bounds = array<i64: 8, 128>}]} {
    %c0 = arith.constant 0 : index
    %c0_0 = arith.constant 0 : index
    %0 = vector.load %arg1[%c0, %c0_0] : memref<8x128xf32, #tpu.memory_space<vmem>>, vector<8x128xf32>
    %c0_1 = arith.constant 0 : index
    %c0_2 = arith.constant 0 : index
    %1 = vector.load %arg2[%c0_1, %c0_2] : memref<2x128xf32, #tpu.memory_space<vmem>>, vector<1x128xf32>
    %c1 = arith.constant 1 : index
    %c0_3 = arith.constant 0 : index
    %2 = vector.load %arg2[%c1, %c0_3] : memref<2x128xf32, #tpu.memory_space<vmem>>, vector<1x128xf32>
    %cst = arith.constant dense<0.000000e+00> : vector<8xf32>
    %3 = vector.multi_reduction <add>, %0, %cst [1] : vector<8x128xf32> to vector<8xf32>
    %4 = vector.shape_cast %3 : vector<8xf32> to vector<8x1xf32>
    %5 = arith.mulf %0, %0 : vector<8x128xf32>
    %cst_4 = arith.constant dense<0.000000e+00> : vector<8xf32>
    %6 = vector.multi_reduction <add>, %5, %cst_4 [1] : vector<8x128xf32> to vector<8xf32>
    %7 = vector.shape_cast %6 : vector<8xf32> to vector<8x1xf32>
    %cst_5 = arith.constant 3.125000e-02 : f32
    %8 = vector.broadcast %cst_5 : f32 to vector<8x1xf32>
    %9 = arith.mulf %4, %8 : vector<8x1xf32>
    %10 = arith.mulf %4, %4 : vector<8x1xf32>
    %cst_6 = arith.constant 3.125000e-02 : f32
    %11 = vector.broadcast %cst_6 : f32 to vector<8x1xf32>
    %12 = arith.mulf %10, %11 : vector<8x1xf32>
    %13 = arith.subf %7, %12 : vector<8x1xf32>
    %cst_7 = arith.constant 0.0322580636 : f32
    %14 = vector.broadcast %cst_7 : f32 to vector<8x1xf32>
    %15 = arith.mulf %13, %14 : vector<8x1xf32>
    %cst_8 = arith.constant 0.000000e+00 : f32
    %16 = vector.broadcast %cst_8 : f32 to vector<8x1xf32>
    %17 = arith.maximumf %15, %16 : vector<8x1xf32>
    %18 = math.sqrt %17 : vector<8x1xf32>
    %cst_9 = arith.constant 9.99999997E-7 : f32
    %19 = vector.broadcast %cst_9 : f32 to vector<8x1xf32>
    %20 = arith.addf %18, %19 : vector<8x1xf32>
    %21 = tpu.reciprocal %20 : vector<8x1xf32> -> vector<8x1xf32>
    %22 = vector.broadcast %9 : vector<8x1xf32> to vector<8x128xf32>
    %23 = arith.subf %0, %22 : vector<8x128xf32>
    %24 = vector.broadcast %1 : vector<1x128xf32> to vector<8x128xf32>
    %25 = arith.mulf %24, %23 : vector<8x128xf32>
    %26 = vector.broadcast %21 : vector<8x1xf32> to vector<8x128xf32>
    %27 = arith.mulf %25, %26 : vector<8x128xf32>
    %28 = vector.broadcast %2 : vector<1x128xf32> to vector<8x128xf32>
    %29 = arith.addf %27, %28 : vector<8x128xf32>
    %c0_10 = arith.constant 0 : index
    %c0_11 = arith.constant 0 : index
    %30 = vector.load %arg3[%c0_10, %c0_11] : memref<8x128xf32, #tpu.memory_space<vmem>>, vector<8x128xf32>
    tpu.vector_store %arg3[%c0_10, %c0_11], %29 {strides = array<i32>} : memref<8x128xf32, #tpu.memory_space<vmem>>, vector<8x128xf32>,
    return
  }
  func.func @transform_0(%arg0: i32) -> (i32, i32) {
    %c0_i32 = arith.constant 0 : i32
    %c0_i32_0 = arith.constant 0 : i32
    return %arg0, %c0_i32 : i32, i32
  }
  func.func @transform_1(%arg0: i32) -> (i32, i32) {
    %c0_i32 = arith.constant 0 : i32
    %c0_i32_0 = arith.constant 0 : i32
    %c0_i32_1 = arith.constant 0 : i32
    return %c0_i32, %c0_i32_0 : i32, i32
  }
  func.func @transform_2(%arg0: i32) -> (i32, i32) {
    %c0_i32 = arith.constant 0 : i32
    %c0_i32_0 = arith.constant 0 : i32
    return %arg0, %c0_i32 : i32, i32
  }
}

</mosaic_0001>

<llo_original>
// kernel: tpu_custom_call.1
$region0: #{tpu_custom_call.1}
  #allocation0 [shape = 'u32[]', space=smem, size = 0x4, offset = 0x4, fixed_abs, tag = 'smem constant byte address 0x4 - core index']
  #allocation1 [shape = 'u32[72,128]{1,0:T(1,128)}', space=vmem, size = 0x9000, scoped, tag = 'internal scratch']
  %s0 = inlined_call_operand.hbm [shape: f32[16,128], index: 0, kind: input, shape index: {}]
  %s1 = inlined_call_operand.hbm [shape: f32[2,128], index: 1, kind: input, shape index: {}]
  %s2 = inlined_call_operand.hbm [shape: f32[16,128], index: 2, kind: output, shape index: {}]
  %s3 = sld [smem:[#allocation0]]
  $region49: #{tpu_custom_call.1} parent=0
    _
  %s5 = ssub.s32 1, %s3
  %s6 = scalar_select 0, %s5, %s3
  $region1: #{tpu_custom_call.1} parent=0
    #allocation2 [shape = 'u8[8192]{0}', space=vmem, size = 0x2000, scoped, tag = 'input window, operand 0']
    #allocation3 [shape = 's32[2]{0}', space=sflag, size = 0x8, scoped, tag = 'scoped memory for tpu_custom_call.1']
    #allocation4 [shape = 's32[2]{0}', space=sflag, size = 0x8, scoped, tag = 'scoped memory for tpu_custom_call.1']
    #allocation5 [shape = 'u8[1024]{0}', space=vmem, size = 0x400, scoped, tag = 'input window, operand 1, single buffered']
    #allocation6 [shape = 's32[1]{0}', space=sflag, size = 0x4, scoped, tag = 'scoped memory for tpu_custom_call.1']
    #allocation7 [shape = 'u8[8192]{0}', space=vmem, size = 0x2000, scoped, tag = 'output window, operand 0']
    %7 = vsyncpa [#allocation3], 0
    %s8 = scalar_lea.sflag [#allocation3], 1
    %9 = vsyncpa %s8, 0
    %10 = vsyncpa [#allocation6], 0
    %11 = vsyncpa [#allocation4], 0
    %s12 = scalar_lea.sflag [#allocation4], 1
    %13 = vsyncpa %s12, 0
    loop: start=0, step=1, limit=4
    $region2: #{tpu_custom_call.1} parent=1 // loop_pre_header
      _
    $region3: #{tpu_custom_call.1} parent=1 // loop_header
      %s15 = sphi 0, %s19
      %p16 = scmp.ge.s32.totalorder %s15, 4
      %s25 = sphi 0, %s27
      %s28 = sphi 0, %s25
      %s29 = sphi 0, %s28
      %s45 = sphi 0, %s29
      %s49 = sphi 0, %s49
      %s51 = sphi 0, %s49
      %s52 = sphi 0, %s51
      %s66 = sphi 0, %s52
      %s72 = sphi 0, %s74
      %s75 = sphi 0, %s72
      %s76 = sphi 0, %s75
      %s92 = sphi 0, %s76
    $region4: #{tpu_custom_call.1} parent=1 // loop_header_branch
      %18 = sbr.rel (%p16) target = $region8
    $region5: #{tpu_custom_call.1} parent=1 // loop_body
      %s20 = ssub.s32 %s15, 1
      %s21 = ssub.s32 %s15, 2
      %s22 = sadd.s32 %s15, 1
      %s23 = ssub.s32 %s15, %s22
      %p24 = scmp.eq.s32.totalorder %s23, 0
      %s26 = sadd.s32 %s25, 1
      %s27 = scalar_select %p24, %s25, %s26
      %p30 = pneg %p24
      %p31 = scmp.eq.s32.totalorder %s15, 1
      %p32 = por %p30, %p31
      %p33 = scmp.ne.s32.totalorder %s25, %s28
      %p34 = scmp.eq.s32.totalorder %s15, 0
      %p35 = por %p33, %p34
      %p36 = scmp.ne.s32.totalorder %s25, %s28
      %p37 = scmp.eq.s32.totalorder %s20, 1
      %p38 = por %p36, %p37
      %p39 = scmp.ne.s32.totalorder %s28, %s29
      %p40 = scmp.eq.s32.totalorder %s20, 0
      %p41 = por %p39, %p40
      %p42 = scmp.ne.s32.totalorder %s28, %s29
      %p43 = scmp.eq.s32.totalorder %s21, 1
      %p44 = por %p42, %p43
      %p46 = scmp.ne.s32.totalorder %s29, %s45
      %p47 = scmp.eq.s32.totalorder %s21, 0
      %p48 = por %p46, %p47
      %s50 = sadd.s32 %s49, 1
      %p53 = scmp.eq.s32.totalorder %s15, 1
      %p54 = scmp.ne.s32.totalorder %s49, %s51
      %p55 = scmp.eq.s32.totalorder %s15, 0
      %p56 = por %p54, %p55
      %p57 = scmp.ne.s32.totalorder %s49, %s51
      %p58 = scmp.eq.s32.totalorder %s20, 1
      %p59 = por %p57, %p58
      %p60 = scmp.ne.s32.totalorder %s51, %s52
      %p61 = scmp.eq.s32.totalorder %s20, 0
      %p62 = por %p60, %p61
      %p63 = scmp.ne.s32.totalorder %s51, %s52
      %p64 = scmp.eq.s32.totalorder %s21, 1
      %p65 = por %p63, %p64
      %p67 = scmp.ne.s32.totalorder %s52, %s66
      %p68 = scmp.eq.s32.totalorder %s21, 0
      %p69 = por %p67, %p68
      %s70 = ssub.s32 %s15, %s22
      %p71 = scmp.eq.s32.totalorder %s70, 0
      %s73 = sadd.s32 %s72, 1
      %s74 = scalar_select %p71, %s72, %s73
      %p77 = pneg %p71
      %p78 = scmp.eq.s32.totalorder %s15, 1
      %p79 = por %p77, %p78
      %p80 = scmp.ne.s32.totalorder %s72, %s75
      %p81 = scmp.eq.s32.totalorder %s15, 0
      %p82 = por %p80, %p81
      %p83 = scmp.ne.s32.totalorder %s72, %s75
      %p84 = scmp.eq.s32.totalorder %s20, 1
      %p85 = por %p83, %p84
      %p86 = scmp.ne.s32.totalorder %s75, %s76
      %p87 = scmp.eq.s32.totalorder %s20, 0
      %p88 = por %p86, %p87
      %p89 = scmp.ne.s32.totalorder %s75, %s76
      %p90 = scmp.eq.s32.totalorder %s21, 1
      %p91 = por %p89, %p90
      %p93 = scmp.ne.s32.totalorder %s76, %s92
      %p94 = scmp.eq.s32.totalorder %s21, 0
      %p95 = por %p93, %p94
      %p96 = scmp.le.s32.totalorder 1, %s15
      %p97 = scmp.lt.s32.totalorder %s15, 3
      %p98 = pnand %p96, %p97
      %p99 = pneg %p98
      // Predicated region
      $region9: #{tpu_custom_call.1} parent=5 // pred_check
        _
      $region10: #{tpu_custom_call.1} parent=5 // pred_check_branch
        %101 = sbr.rel (%p98) target = $region12
      $region11: #{tpu_custom_call.1} parent=5 // pred_region
        %s102 = ssub.s32 %s15, 1
        // Predicated region
        $region13: #{tpu_custom_call.1} parent=11 // pred_check
          %p103 = pneg %p62
        $region14: #{tpu_custom_call.1} parent=11 // pred_check_branch
          %105 = sbr.rel (%p103) target = $region16
        $region15: #{tpu_custom_call.1} parent=11 // pred_region
          %107 = vsyncadd [#allocation6], 0
          %s109 = sshll.u32 %s1, 4
          %s110 = int_to_ptr.hbm [resolvable:$true] %s109
          %s111 = sshll.u32 [#allocation5], 4
          %s112 = int_to_ptr.vmem [resolvable:$true] %s111
          %114 = dma.hbm_to_vmem [thread:$0]  %s110, 32, %s112, [#allocation6]
        $region16: #{tpu_custom_call.1} parent=11 // pred_fallthru
          _
      $region12: #{tpu_custom_call.1} parent=5 // pred_fallthru
        _
      %p115 = scmp.lt.s32.totalorder %s15, 2
      // Predicated region
      $region17: #{tpu_custom_call.1} parent=5 // pred_check
        %p116 = pneg %p115
      $region18: #{tpu_custom_call.1} parent=5 // pred_check_branch
        %118 = sbr.rel (%p116) target = $region20
      $region19: #{tpu_custom_call.1} parent=5 // pred_region
        // Predicated region
        $region21: #{tpu_custom_call.1} parent=19 // pred_check
          %p119 = pneg %p35
        $region22: #{tpu_custom_call.1} parent=19 // pred_check_branch
          %121 = sbr.rel (%p119) target = $region24
        $region23: #{tpu_custom_call.1} parent=19 // pred_region
          %s122 = sand.u32 %s25, 1
          %s123 = scalar_lea.sflag [#allocation3], %s122
          %s124 = sand.u32 %s25, 1
          %s125 = smul.addr %s124, 8
          %s126 = scalar_lea.vmem [#allocation2], %s125
          %128 = vsyncadd %s123, 0
          %s129 = smul.addr %s15, 8
          %s130 = scalar_lea.hbm %s0, %s129
          %s132 = sshll.u32 %s130, 4
          %s133 = int_to_ptr.hbm [resolvable:$true] %s132
          %s134 = sshll.u32 %s126, 4
          %s135 = int_to_ptr.vmem [resolvable:$true] %s134
          %137 = dma.hbm_to_vmem [thread:$0]  %s133, 128, %s135, %s123
        $region24: #{tpu_custom_call.1} parent=19 // pred_fallthru
          _
      $region20: #{tpu_custom_call.1} parent=5 // pred_fallthru
        _
      %p138 = scmp.le.s32.totalorder 1, %s15
      %p139 = scmp.lt.s32.totalorder %s15, 3
      %p140 = pnand %p138, %p139
      %p141 = pneg %p140
      // Predicated region
      $region25: #{tpu_custom_call.1} parent=5 // pred_check
        _
      $region26: #{tpu_custom_call.1} parent=5 // pred_check_branch
        %143 = sbr.rel (%p140) target = $region28
      $region27: #{tpu_custom_call.1} parent=5 // pred_region
        %s144 = ssub.s32 %s15, 1
        %s145 = sand.u32 %s28, 1
        %s146 = scalar_lea.sflag [#allocation3], %s145
        %s147 = sand.u32 %s28, 1
        %s148 = smul.addr %s147, 8
        %s149 = scalar_lea.vmem [#allocation2], %s148
        // Predicated region
        $region29: #{tpu_custom_call.1} parent=27 // pred_check
          %p150 = pneg %p41
        $region30: #{tpu_custom_call.1} parent=27 // pred_check_branch
          %152 = sbr.rel (%p150) target = $region32
        $region31: #{tpu_custom_call.1} parent=27 // pred_region
          %154 = dma.done %s146, 128
        $region32: #{tpu_custom_call.1} parent=27 // pred_fallthru
          _
        // Predicated region
        $region33: #{tpu_custom_call.1} parent=27 // pred_check
          %p155 = pneg %p62
        $region34: #{tpu_custom_call.1} parent=27 // pred_check_branch
          %157 = sbr.rel (%p155) target = $region36
        $region35: #{tpu_custom_call.1} parent=27 // pred_region
          %159 = dma.done [#allocation6], 32
        $region36: #{tpu_custom_call.1} parent=27 // pred_fallthru
          _
        %s160 = sand.u32 %s28, 1
        %s161 = scalar_lea.sflag [#allocation3], %s160
        %s162 = sand.u32 %s28, 1
        %s163 = smul.addr %s162, 8
        %s164 = scalar_lea.vmem [#allocation2], %s163
        %p165 = pneg %p41
        %p166 = pneg %p38
        %p167 = pneg %p62
        %p168 = pneg %p59
        %p169 = pneg %p88
        %p170 = pneg %p85
        %s171 = sand.u32 %s75, 1
        %s172 = scalar_lea.sflag [#allocation4], %s171
        %s173 = sand.u32 %s75, 1
        %s174 = smul.addr %s173, 8
        %s175 = scalar_lea.vmem [#allocation7], %s174
        %v176 = vld [vmem:[%s149] sm:$0xff]
        %v177 = vld [vmem:[#allocation5] sm:$0x1]
        %v178 = vld [vmem:[#allocation5 + $0x1] sm:$0x1]
        %179 = vadd.xlane.f32.xlu0 %v176
        %v180 = vpop.xlane.xlu0 %179
        %v181 = vmul.f32 %v176, %v176
        %182 = vadd.xlane.f32.xlu0 %v181
        %v183 = vpop.xlane.xlu0 %182
        %v184 = vmul.f32 %v180, 0.03125
        %v185 = vmul.f32 %v180, %v180
        %v186 = vmul.f32 %v185, 0.03125
        %v187 = vsub.f32 %v183, %v186
        %v188 = vmul.f32 %v187, 0.032258064
        %v189 = vmax.f32 %v188, 0.0
        %v190 = vrsqrt.pop %v189
        %v191 = vmul.f32 %v190, %v189
        %v192 = vmul.f32 %v191, %v190
        %v193 = vmul.f32 0.5, %v192
        %v194 = vsub.f32 1.5, %v193
        %v195 = vmul.f32 %v190, %v194
        %v196 = vmul.f32 %v189, %v195
        %vm197 = vcmp.eq.f32.partialorder %v189, inf
        %v198 = vsel %vm197, %v189, %v196
        %vm199 = vcmp.eq.f32.partialorder %v189, 0.0
        %v200 = vand.u32 %v189, 2147483648
        %v201 = vsel %vm199, %v200, %v198
        %v202 = vadd.f32 %v201, 1e-06
        %v203 = vrcp.pop %v202
        %v204 = vmul.f32 %v202, %v203
        %v205 = vsub.f32 1.0, %v204
        %v206 = vmul.f32 %v203, %v205
        %v207 = vadd.f32 %v203, %v206
        %vm208 = vweird.f32 %v202
        %vm209 = vweird.f32 %v203
        %vm210 = vmor %vm208, %vm209
        %v211 = vsel %vm210, %v203, %v207
        %v212 = vand.u32 2147483647, %v202
        %vm213 = vcmp.eq.f32.partialorder %v212, 8.507059e+37
        %v214 = vand.u32 %v202, 2147483648
        %v215 = vor.u32 1.1754944e-38, %v214
        %v216 = vsel %vm213, %v215, %v211
        %v217 = vsub.f32 %v176, %v184
        %v218 = vperm.slane %v177, 0
        %v219 = vmul.f32 %v218, %v217
        %v220 = vmul.f32 %v219, %v216
        %v221 = vperm.slane %v178, 0
        %v222 = vadd.f32 %v220, %v221
        %223 = vst [vmem:[%s175] sm:$0xff] %v222
        %s224 = sand.u32 %s75, 1
        %s225 = scalar_lea.sflag [#allocation4], %s224
        %s226 = sand.u32 %s75, 1
        %s227 = smul.addr %s226, 8
        %s228 = scalar_lea.vmem [#allocation7], %s227
        // Predicated region
        $region37: #{tpu_custom_call.1} parent=27 // pred_check
          %p229 = pneg %p85
        $region38: #{tpu_custom_call.1} parent=27 // pred_check_branch
          %231 = sbr.rel (%p229) target = $region40
        $region39: #{tpu_custom_call.1} parent=27 // pred_region
          %233 = vsyncadd %s225, 0
          %s234 = smul.addr %s20, 8
          %s235 = scalar_lea.hbm %s2, %s234
          %s237 = sshll.u32 %s228, 4
          %s238 = int_to_ptr.vmem [resolvable:$true] %s237
          %s239 = sshll.u32 %s235, 4
          %s240 = int_to_ptr.hbm [resolvable:$true] %s239
          %242 = dma.vmem_to_hbm [thread:$0]  %s238, 128, %s240, %s225
        $region40: #{tpu_custom_call.1} parent=27 // pred_fallthru
          _
      $region28: #{tpu_custom_call.1} parent=5 // pred_fallthru
        _
      %p243 = scmp.le.s32.totalorder 2, %s15
      // Predicated region
      $region41: #{tpu_custom_call.1} parent=5 // pred_check
        %p244 = pneg %p243
      $region42: #{tpu_custom_call.1} parent=5 // pred_check_branch
        %246 = sbr.rel (%p244) target = $region44
      $region43: #{tpu_custom_call.1} parent=5 // pred_region
        %s247 = ssub.s32 %s15, 2
        // Predicated region
        $region45: #{tpu_custom_call.1} parent=43 // pred_check
          %p248 = pneg %p91
        $region46: #{tpu_custom_call.1} parent=43 // pred_check_branch
          %250 = sbr.rel (%p248) target = $region48
        $region47: #{tpu_custom_call.1} parent=43 // pred_region
          %s251 = sand.u32 %s76, 1
          %s252 = scalar_lea.sflag [#allocation4], %s251
          %s253 = sand.u32 %s76, 1
          %s254 = smul.addr %s253, 8
          %s255 = scalar_lea.vmem [#allocation7], %s254
          %257 = dma.done %s252, 128
        $region48: #{tpu_custom_call.1} parent=43 // pred_fallthru
          _
      $region44: #{tpu_custom_call.1} parent=5 // pred_fallthru
        _
    $region6: #{tpu_custom_call.1} parent=1 // loop_footer
      %s19 = sadd.s32 1, %s15
    $region7: #{tpu_custom_call.1} parent=1 // loop_footer_branch
      %14 = sbr.rel target = $region3
    $region8: #{tpu_custom_call.1} parent=1 // loop_exit
      _
    %258 = vsyncpa [#allocation3], 1
    %s259 = scalar_lea.sflag [#allocation3], 1
    %260 = vsyncpa %s259, 1
    %261 = vsyncpa [#allocation6], 1
    %262 = vsyncpa [#allocation4], 1
    %s263 = scalar_lea.sflag [#allocation4], 1
    %264 = vsyncpa %s263, 1

</llo_original>
